<compile_context>
chip_gen: v7x
topology: tpu7x:2x2x1
jax: 0.10.0
libtpu: 0.0.40
codegen_flags: <defaults>
</compile_context>

<pallas_src>
import jax
import jax.numpy as jnp
from jax.experimental import pallas as pl
from jax.experimental.pallas import tpu as pltpu


def _round_up(n, m):
    return ((n + m - 1) // m) * m


def _make_mlp_kernel(num_layers, hidden_pads):
    """Fused MLP kernel. Ref order: (x, w0, b0, ..., w_{L-1}, b_{L-1}, out[, h_scratch]).

    hidden_pads[i] = padded output width of hidden layer i (i < num_layers-1).
    """
    use_scratch = num_layers > 1

    def kernel(*refs):
        x_ref = refs[0]
        o_ref = refs[1 + 2 * num_layers]
        h_ref = refs[2 + 2 * num_layers] if use_scratch else None

        a = x_ref[...].astype(jnp.bfloat16)              # bf16 MXU operand
        for i in range(num_layers):
            w = refs[1 + 2 * i][...]                     # bf16, (in, out_pad)
            b = refs[2 + 2 * i][...]                     # f32,  (1, out_pad)
            y = jnp.dot(a, w, preferred_element_type=jnp.float32) + b
            if i != num_layers - 1:
                y = jnp.maximum(y, 0.0)                  # ReLU in f32
                # Dropout(p) in eval mode == identity.
                d = hidden_pads[i]
                h_ref[:, :d] = y.astype(jnp.bfloat16)    # lane-dense store
                a = h_ref[:, :d]                         # next bf16 operand
            else:
                o_ref[...] = y.astype(o_ref.dtype)       # lane-dense (padded) store

    return kernel


def _pad_and_cast_params(params):
    """Pad each layer's output width to a multiple of 128; W -> bf16, b -> f32."""
    padded = []
    prev = params[0][0].shape[0]          # input feature dim (left unpadded)
    for (w, b) in params:
        din, dout = w.shape
        dout_p = _round_up(dout, 128)
        w_p = jnp.zeros((prev, dout_p), jnp.bfloat16)
        w_p = w_p.at[:din, :dout].set(w.astype(jnp.bfloat16))
        b_p = jnp.zeros((1, dout_p), jnp.float32)
        b_p = b_p.at[:, :dout].set(jnp.reshape(b, (1, dout)).astype(jnp.float32))
        padded.append((w_p, b_p))
        prev = dout_p
    return padded


def _choose_batch_tile(B, feat, out_pad, max_pad, param_bytes,
                       vmem_budget=16 * 1024 * 1024, max_tile=512):
    """Largest multiple-of-8 divisor of B (<= max_tile) that fits the VMEM budget,
    preferring tiles that give >= 2 grid steps (pipelining + megacore)."""
    per_row = (2 * 4 * feat        # double-buffered x tile (f32)
               + 2 * 4 * out_pad   # double-buffered out tile (f32)
               + 2 * max_pad       # bf16 activation scratch
               + 4 * max_pad)      # f32 accumulator headroom

    def fits(t):
        return param_bytes + t * per_row <= vmem_budget

    cands = [t for t in range(8, min(B, max_tile) + 1, 8) if B % t == 0]
    multi = [t for t in cands if t < B and fits(t)]
    if multi:
        return max(multi)
    ok = [t for t in cands if fits(t)]
    if ok:
        return max(ok)
    return cands[0] if cands else B


def _mlp_pallas(x, params, batch_tile, single_copy_params):
    B, F = x.shape
    num_layers = len(params)
    padded = _pad_and_cast_params(params)
    out_dim = params[-1][0].shape[1]
    out_pad = padded[-1][0].shape[1]
    hidden_pads = [w.shape[1] for (w, _) in padded[:-1]]
    max_pad = max(w.shape[1] for (w, _) in padded)
    param_bytes = sum(w.nbytes + b.nbytes for (w, b) in padded)

    if batch_tile is None:
        batch_tile = _choose_batch_tile(B, F, out_pad, max_pad, param_bytes)
    assert B % batch_tile == 0, "batch_tile must divide the batch"
    grid = (B // batch_tile,)

    in_specs = [pl.BlockSpec((batch_tile, F), lambda i: (i, 0))]
    flat_args = [x]
    for (w_p, b_p) in padded:
        if single_copy_params:
            # Whole array resident in VMEM, outside the pipelined path
            # (no double buffering of constant-index operands).
            in_specs.append(pl.BlockSpec(memory_space=pltpu.MemorySpace.VMEM))
            in_specs.append(pl.BlockSpec(memory_space=pltpu.MemorySpace.VMEM))
        else:
            in_specs.append(pl.BlockSpec(w_p.shape, lambda i: (0, 0)))
            in_specs.append(pl.BlockSpec(b_p.shape, lambda i: (0, 0)))
        flat_args += [w_p, b_p]

    out_spec = pl.BlockSpec((batch_tile, out_pad), lambda i: (i, 0))
    scratch_shapes = ([pltpu.VMEM((batch_tile, max(hidden_pads)), jnp.bfloat16)]
                      if hidden_pads else [])

    flops = 2 * B * sum(w.shape[0] * w.shape[1] for (w, _) in padded)
    bytes_accessed = x.nbytes + param_bytes + B * out_pad * 4

    out_padded = pl.pallas_call(
        _make_mlp_kernel(num_layers, hidden_pads),
        out_shape=jax.ShapeDtypeStruct((B, out_pad), x.dtype),
        grid=grid,
        in_specs=in_specs,
        out_specs=out_spec,
        scratch_shapes=scratch_shapes,
        compiler_params=pltpu.CompilerParams(
            dimension_semantics=("parallel",)),
        cost_estimate=pl.CostEstimate(
            flops=flops, transcendentals=0, bytes_accessed=bytes_accessed),
    )(*flat_args)
    return out_padded[:, :out_dim]


def mlp_feature_extra(x, params, *, batch_tile=None):
    """Fused MLP forward.

    Args:
      x: (B, feature_dim) array.
      params: list of (W, b) with W: (in_dim, out_dim), b: (1, out_dim)
              (W is the transpose of PyTorch Linear.weight).
      batch_tile: rows per grid step (default: auto from VMEM budget).
    Returns:
      (B, out_dim) array, same dtype as x.
    """
    try:
        return _mlp_pallas(x, params, batch_tile, single_copy_params=True)
    except Exception:
        # Fallback for Pallas versions that reject memory-space-only VMEM
        # input specs: constant-index blocked (double-buffered) weight specs.
        return _mlp_pallas(x, params, batch_tile, single_copy_params=False)


def init_params(key, feature_dim, hidden_dims):
    """Parameter init mimicking the module's layer shapes (PyTorch Linear default)."""
    dims = [feature_dim] + list(hidden_dims)
    params = []
    for i in range(len(dims) - 1):
        key, kw, kb = jax.random.split(key, 3)
        bound = 1.0 / jnp.sqrt(dims[i])
        w = jax.random.uniform(kw, (dims[i], dims[i + 1]),
                               minval=-bound, maxval=bound, dtype=jnp.float32)
        b = jax.random.uniform(kb, (1, dims[i + 1]),
                               minval=-bound, maxval=bound, dtype=jnp.float32)
        params.append((w, b))
    return params


def mlp_reference(x, params):
    """Plain-JAX f32 reference of the (eval-mode) forward pass."""
    h = x.astype(jnp.float32)
    n = len(params)
    for i, (w, b) in enumerate(params):
        h = h @ w + b
        if i != n - 1:
            h = jnp.maximum(h, 0.0)
    return h.astype(x.dtype)


if __name__ == "__main__":
    key = jax.random.PRNGKey(0)
    k_x, k_p = jax.random.split(key)

    batch = 128
    feature_dim = 32
    hidden_dims = [64, 32]   # MlpFeatureExtra(feature_dim=32, hidden_dims=[64, 32])

    x = jax.random.normal(k_x, (batch, feature_dim), dtype=jnp.float32)
    params = init_params(k_p, feature_dim, hidden_dims)

    out = mlp_feature_extra(x, params)
    out = jax.block_until_ready(out)

    ref = mlp_reference(x, params)
    assert out.shape == (batch, hidden_dims[-1])
    # bf16 MXU operands with f32 accumulation -> loosened tolerance vs f32 ref.
    assert jnp.allclose(out, ref, atol=5e-2, rtol=5e-2), "mismatch vs reference"

    print("KERNEL_OK")
</pallas_src>

<mosaic_0001>
module attributes {stable_mosaic.version = 11 : i64} {
  func.func @kernel(%arg0: i32, %arg1: memref<64x32xf32, #tpu.memory_space<vmem>>, %arg2: memref<32x128xbf16, #tpu.memory_space<vmem>>, %arg3: memref<1x128xf32, #tpu.memory_space<vmem>>, %arg4: memref<128x128xbf16, #tpu.memory_space<vmem>>, %arg5: memref<1x128xf32, #tpu.memory_space<vmem>>, %arg6: memref<64x128xf32, #tpu.memory_space<vmem>>, %arg7: memref<64x128xbf16, #tpu.memory_space<vmem>>) attributes {dimension_semantics = [#tpu.dimension_semantics<parallel>], iteration_bounds = array<i64: 2>, scalar_prefetch = 0 : i64, scratch_operands = 1 : i64, tpu.core_type = #tpu.core_type<tc>, window_params = [{transform_indices = @transform_0, window_bounds = array<i64: 64, 32>}, {pipeline_mode = #tpu.pipeline_mode<synchronous>, transform_indices = @transform_1, window_bounds = array<i64: 32, 128>}, {pipeline_mode = #tpu.pipeline_mode<synchronous>, transform_indices = @transform_2, window_bounds = array<i64: 1, 128>}, {pipeline_mode = #tpu.pipeline_mode<synchronous>, transform_indices = @transform_3, window_bounds = array<i64: 128, 128>}, {pipeline_mode = #tpu.pipeline_mode<synchronous>, transform_indices = @transform_4, window_bounds = array<i64: 1, 128>}, {transform_indices = @transform_5, window_bounds = array<i64: 64, 128>}]} {
    %c0 = arith.constant 0 : index
    %c0_0 = arith.constant 0 : index
    %0 = vector.load %arg1[%c0, %c0_0] : memref<64x32xf32, #tpu.memory_space<vmem>>, vector<64x32xf32>
    %1 = arith.truncf %0 : vector<64x32xf32> to vector<64x32xbf16>
    %c0_1 = arith.constant 0 : index
    %c0_2 = arith.constant 0 : index
    %2 = vector.load %arg2[%c0_1, %c0_2] : memref<32x128xbf16, #tpu.memory_space<vmem>>, vector<32x128xbf16>
    %c0_3 = arith.constant 0 : index
    %c0_4 = arith.constant 0 : index
    %3 = vector.load %arg3[%c0_3, %c0_4] : memref<1x128xf32, #tpu.memory_space<vmem>>, vector<1x128xf32>
    %cst = arith.constant dense<0.000000e+00> : vector<64x128xf32>
    %4 = tpu.matmul %1, %2, %cst {dimension_numbers = #tpu.dot_dimension_numbers<[1], [0], [0], [1], [0, 0, 1, 1], [], []>} : vector<64x32xbf16>, vector<32x128xbf16>, vector<64x128xf32> -> vector<64x128xf32>
    %5 = vector.broadcast %3 : vector<1x128xf32> to vector<64x128xf32>
    %6 = arith.addf %4, %5 : vector<64x128xf32>
    %cst_5 = arith.constant 0.000000e+00 : f32
    %7 = vector.broadcast %cst_5 : f32 to vector<64x128xf32>
    %8 = arith.maximumf %6, %7 : vector<64x128xf32>
    %9 = arith.truncf %8 : vector<64x128xf32> to vector<64x128xbf16>
    %c0_6 = arith.constant 0 : index
    %c0_7 = arith.constant 0 : index
    %10 = vector.load %arg7[%c0_6, %c0_7] : memref<64x128xbf16, #tpu.memory_space<vmem>>, vector<64x128xbf16>
    tpu.vector_store %arg7[%c0_6, %c0_7], %9 {strides = array<i32>} : memref<64x128xbf16, #tpu.memory_space<vmem>>, vector<64x128xbf16>,
    %c0_8 = arith.constant 0 : index
    %c0_9 = arith.constant 0 : index
    %11 = vector.load %arg7[%c0_8, %c0_9] : memref<64x128xbf16, #tpu.memory_space<vmem>>, vector<64x128xbf16>
    %c0_10 = arith.constant 0 : index
    %c0_11 = arith.constant 0 : index
    %12 = vector.load %arg4[%c0_10, %c0_11] : memref<128x128xbf16, #tpu.memory_space<vmem>>, vector<128x128xbf16>
    %c0_12 = arith.constant 0 : index
    %c0_13 = arith.constant 0 : index
    %13 = vector.load %arg5[%c0_12, %c0_13] : memref<1x128xf32, #tpu.memory_space<vmem>>, vector<1x128xf32>
    %cst_14 = arith.constant dense<0.000000e+00> : vector<64x128xf32>
    %14 = tpu.matmul %11, %12, %cst_14 {dimension_numbers = #tpu.dot_dimension_numbers<[1], [0], [0], [1], [0, 0, 1, 1], [], []>} : vector<64x128xbf16>, vector<128x128xbf16>, vector<64x128xf32> -> vector<64x128xf32>
    %15 = vector.broadcast %13 : vector<1x128xf32> to vector<64x128xf32>
    %16 = arith.addf %14, %15 : vector<64x128xf32>
    %c0_15 = arith.constant 0 : index
    %c0_16 = arith.constant 0 : index
    %17 = vector.load %arg6[%c0_15, %c0_16] : memref<64x128xf32, #tpu.memory_space<vmem>>, vector<64x128xf32>
    tpu.vector_store %arg6[%c0_15, %c0_16], %16 {strides = array<i32>} : memref<64x128xf32, #tpu.memory_space<vmem>>, vector<64x128xf32>,
    return
  }
  func.func @transform_0(%arg0: i32) -> (i32, i32) {
    %c0_i32 = arith.constant 0 : i32
    %c0_i32_0 = arith.constant 0 : i32
    return %arg0, %c0_i32 : i32, i32
  }
  func.func @transform_1(%arg0: i32) -> (i32, i32) {
    %c0_i32 = arith.constant 0 : i32
    %c0_i32_0 = arith.constant 0 : i32
    %c0_i32_1 = arith.constant 0 : i32
    return %c0_i32, %c0_i32_0 : i32, i32
  }
  func.func @transform_2(%arg0: i32) -> (i32, i32) {
    %c0_i32 = arith.constant 0 : i32
    %c0_i32_0 = arith.constant 0 : i32
    %c0_i32_1 = arith.constant 0 : i32
    return %c0_i32, %c0_i32_0 : i32, i32
  }
  func.func @transform_3(%arg0: i32) -> (i32, i32) {
    %c0_i32 = arith.constant 0 : i32
    %c0_i32_0 = arith.constant 0 : i32
    %c0_i32_1 = arith.constant 0 : i32
    return %c0_i32, %c0_i32_0 : i32, i32
  }
  func.func @transform_4(%arg0: i32) -> (i32, i32) {
    %c0_i32 = arith.constant 0 : i32
    %c0_i32_0 = arith.constant 0 : i32
    %c0_i32_1 = arith.constant 0 : i32
    return %c0_i32, %c0_i32_0 : i32, i32
  }
  func.func @transform_5(%arg0: i32) -> (i32, i32) {
    %c0_i32 = arith.constant 0 : i32
    %c0_i32_0 = arith.constant 0 : i32
    return %arg0, %c0_i32 : i32, i32
  }
}

module attributes {stable_mosaic.version = 11 : i64} {
  func.func @kernel(%arg0: i32, %arg1: memref<64x32xf32, #tpu.memory_space<vmem>>, %arg2: memref<32x128xbf16, #tpu.memory_space<vmem>>, %arg3: memref<1x128xf32, #tpu.memory_space<vmem>>, %arg4: memref<128x128xbf16, #tpu.memory_space<vmem>>, %arg5: memref<1x128xf32, #tpu.memory_space<vmem>>, %arg6: memref<64x128xf32, #tpu.memory_space<vmem>>, %arg7: memref<64x128xbf16, #tpu.memory_space<vmem>>) attributes {dimension_semantics = [#tpu.dimension_semantics<parallel>], iteration_bounds = array<i64: 2>, scalar_prefetch = 0 : i64, scratch_operands = 1 : i64, tpu.core_type = #tpu.core_type<tc>, window_params = [{transform_indices = @transform_0, window_bounds = array<i64: 64, 32>}, {pipeline_mode = #tpu.pipeline_mode<synchronous>, transform_indices = @transform_1, window_bounds = array<i64: 32, 128>}, {pipeline_mode = #tpu.pipeline_mode<synchronous>, transform_indices = @transform_2, window_bounds = array<i64: 1, 128>}, {pipeline_mode = #tpu.pipeline_mode<synchronous>, transform_indices = @transform_3, window_bounds = array<i64: 128, 128>}, {pipeline_mode = #tpu.pipeline_mode<synchronous>, transform_indices = @transform_4, window_bounds = array<i64: 1, 128>}, {transform_indices = @transform_5, window_bounds = array<i64: 64, 128>}]} {
    %c0 = arith.constant 0 : index
    %c0_0 = arith.constant 0 : index
    %0 = vector.load %arg1[%c0, %c0_0] : memref<64x32xf32, #tpu.memory_space<vmem>>, vector<64x32xf32>
    %1 = arith.truncf %0 : vector<64x32xf32> to vector<64x32xbf16>
    %c0_1 = arith.constant 0 : index
    %c0_2 = arith.constant 0 : index
    %2 = vector.load %arg2[%c0_1, %c0_2] : memref<32x128xbf16, #tpu.memory_space<vmem>>, vector<32x128xbf16>
    %c0_3 = arith.constant 0 : index
    %c0_4 = arith.constant 0 : index
    %3 = vector.load %arg3[%c0_3, %c0_4] : memref<1x128xf32, #tpu.memory_space<vmem>>, vector<1x128xf32>
    %cst = arith.constant dense<0.000000e+00> : vector<64x128xf32>
    %4 = tpu.matmul %1, %2, %cst {dimension_numbers = #tpu.dot_dimension_numbers<[1], [0], [0], [1], [0, 0, 1, 1], [], []>} : vector<64x32xbf16>, vector<32x128xbf16>, vector<64x128xf32> -> vector<64x128xf32>
    %5 = vector.broadcast %3 : vector<1x128xf32> to vector<64x128xf32>
    %6 = arith.addf %4, %5 : vector<64x128xf32>
    %cst_5 = arith.constant 0.000000e+00 : f32
    %7 = vector.broadcast %cst_5 : f32 to vector<64x128xf32>
    %8 = arith.maximumf %6, %7 : vector<64x128xf32>
    %9 = arith.truncf %8 : vector<64x128xf32> to vector<64x128xbf16>
    %c0_6 = arith.constant 0 : index
    %c0_7 = arith.constant 0 : index
    %10 = vector.load %arg7[%c0_6, %c0_7] : memref<64x128xbf16, #tpu.memory_space<vmem>>, vector<64x128xbf16>
    tpu.vector_store %arg7[%c0_6, %c0_7], %9 {strides = array<i32>} : memref<64x128xbf16, #tpu.memory_space<vmem>>, vector<64x128xbf16>,
    %c0_8 = arith.constant 0 : index
    %c0_9 = arith.constant 0 : index
    %11 = vector.load %arg7[%c0_8, %c0_9] : memref<64x128xbf16, #tpu.memory_space<vmem>>, vector<64x128xbf16>
    %c0_10 = arith.constant 0 : index
    %c0_11 = arith.constant 0 : index
    %12 = vector.load %arg4[%c0_10, %c0_11] : memref<128x128xbf16, #tpu.memory_space<vmem>>, vector<128x128xbf16>
    %c0_12 = arith.constant 0 : index
    %c0_13 = arith.constant 0 : index
    %13 = vector.load %arg5[%c0_12, %c0_13] : memref<1x128xf32, #tpu.memory_space<vmem>>, vector<1x128xf32>
    %cst_14 = arith.constant dense<0.000000e+00> : vector<64x128xf32>
    %14 = tpu.matmul %11, %12, %cst_14 {dimension_numbers = #tpu.dot_dimension_numbers<[1], [0], [0], [1], [0, 0, 1, 1], [], []>} : vector<64x128xbf16>, vector<128x128xbf16>, vector<64x128xf32> -> vector<64x128xf32>
    %15 = vector.broadcast %13 : vector<1x128xf32> to vector<64x128xf32>
    %16 = arith.addf %14, %15 : vector<64x128xf32>
    %c0_15 = arith.constant 0 : index
    %c0_16 = arith.constant 0 : index
    %17 = vector.load %arg6[%c0_15, %c0_16] : memref<64x128xf32, #tpu.memory_space<vmem>>, vector<64x128xf32>
    tpu.vector_store %arg6[%c0_15, %c0_16], %16 {strides = array<i32>} : memref<64x128xf32, #tpu.memory_space<vmem>>, vector<64x128xf32>,
    return
  }
  func.func @transform_0(%arg0: i32) -> (i32, i32) {
    %c0_i32 = arith.constant 0 : i32
    %c0_i32_0 = arith.constant 0 : i32
    return %arg0, %c0_i32 : i32, i32
  }
  func.func @transform_1(%arg0: i32) -> (i32, i32) {
    %c0_i32 = arith.constant 0 : i32
    %c0_i32_0 = arith.constant 0 : i32
    %c0_i32_1 = arith.constant 0 : i32
    return %c0_i32, %c0_i32_0 : i32, i32
  }
  func.func @transform_2(%arg0: i32) -> (i32, i32) {
    %c0_i32 = arith.constant 0 : i32
    %c0_i32_0 = arith.constant 0 : i32
    %c0_i32_1 = arith.constant 0 : i32
    return %c0_i32, %c0_i32_0 : i32, i32
  }
  func.func @transform_3(%arg0: i32) -> (i32, i32) {
    %c0_i32 = arith.constant 0 : i32
    %c0_i32_0 = arith.constant 0 : i32
    %c0_i32_1 = arith.constant 0 : i32
    return %c0_i32, %c0_i32_0 : i32, i32
  }
  func.func @transform_4(%arg0: i32) -> (i32, i32) {
    %c0_i32 = arith.constant 0 : i32
    %c0_i32_0 = arith.constant 0 : i32
    %c0_i32_1 = arith.constant 0 : i32
    return %c0_i32, %c0_i32_0 : i32, i32
  }
  func.func @transform_5(%arg0: i32) -> (i32, i32) {
    %c0_i32 = arith.constant 0 : i32
    %c0_i32_0 = arith.constant 0 : i32
    return %arg0, %c0_i32 : i32, i32
  }
}

</mosaic_0001>

<llo_original>
// kernel: tpu_custom_call.1
$region0: #{tpu_custom_call.1}
  #allocation0 [shape = 'u32[]', space=smem, size = 0x4, offset = 0x4, fixed_abs, tag = 'smem constant byte address 0x4 - core index']
  #allocation1 [shape = 'u32[144,128]{1,0:T(1,128)}', space=vmem, size = 0x12000, scoped, tag = 'internal scratch']
  #allocation2 [shape = 'bf16[64,128]{1,0:T(16,128)(2,1)}', space=vmem, size = 0x4000, scoped, tag = 'scratch operand']
  %s0 = inlined_call_operand.vmem [shape: f32[128,32], index: 0, kind: input, shape index: {}]
  %s1 = inlined_call_operand.vmem [shape: bf16[32,128], index: 1, kind: input, shape index: {}]
  %s2 = inlined_call_operand.vmem [shape: f32[1,128], index: 2, kind: input, shape index: {}]
  %s3 = inlined_call_operand.vmem [shape: bf16[128,128], index: 3, kind: input, shape index: {}]
  %s4 = inlined_call_operand.vmem [shape: f32[1,128], index: 4, kind: input, shape index: {}]
  %s5 = inlined_call_operand.hbm [shape: f32[128,128], index: 5, kind: output, shape index: {}]
  %s6 = sld [smem:[#allocation0]]
  $region53: #{tpu_custom_call.1} parent=0
    _
  %s8 = ssub.s32 1, %s6
  %s9 = scalar_select 0, %s8, %s6
  $region1: #{tpu_custom_call.1} parent=0
    #allocation3 [shape = 'u8[65536]{0}', space=vmem, size = 0x10000, scoped, tag = 'output window, operand 0']
    #allocation4 [shape = 's32[2]{0}', space=sflag, size = 0x8, scoped, tag = 'scoped memory for tpu_custom_call.1']
    %10 = vsyncpa [#allocation4], 0
    %s11 = scalar_lea.sflag [#allocation4], 1
    %12 = vsyncpa %s11, 0
    loop: start=0, step=1, limit=4
    $region2: #{tpu_custom_call.1} parent=1 // loop_pre_header
      _
    $region3: #{tpu_custom_call.1} parent=1 // loop_header
      %s14 = sphi 0, %s18
      %p15 = scmp.ge.s32.totalorder %s14, 4
      %s24 = sphi 0, %s26
      %s27 = sphi 0, %s24
      %s28 = sphi 0, %s27
      %s44 = sphi 0, %s28
      %s48 = sphi 0, %s48
      %s50 = sphi 0, %s48
      %s51 = sphi 0, %s50
      %s65 = sphi 0, %s51
      %s69 = sphi 0, %s69
      %s71 = sphi 0, %s69
      %s72 = sphi 0, %s71
      %s86 = sphi 0, %s72
      %s90 = sphi 0, %s90
      %s92 = sphi 0, %s90
      %s93 = sphi 0, %s92
      %s107 = sphi 0, %s93
      %s111 = sphi 0, %s111
      %s113 = sphi 0, %s111
      %s114 = sphi 0, %s113
      %s128 = sphi 0, %s114
      %s134 = sphi 0, %s136
      %s137 = sphi 0, %s134
      %s138 = sphi 0, %s137
      %s154 = sphi 0, %s138
    $region4: #{tpu_custom_call.1} parent=1 // loop_header_branch
      %17 = sbr.rel (%p15) target = $region8
    $region5: #{tpu_custom_call.1} parent=1 // loop_body
      %s19 = ssub.s32 %s14, 1
      %s20 = ssub.s32 %s14, 2
      %s21 = sadd.s32 %s14, 1
      %s22 = ssub.s32 %s14, %s21
      %p23 = scmp.eq.s32.totalorder %s22, 0
      %s25 = sadd.s32 %s24, 1
      %s26 = scalar_select %p23, %s24, %s25
      %p29 = pneg %p23
      %p30 = scmp.eq.s32.totalorder %s14, 1
      %p31 = por %p29, %p30
      %p32 = scmp.ne.s32.totalorder %s24, %s27
      %p33 = scmp.eq.s32.totalorder %s14, 0
      %p34 = por %p32, %p33
      %p35 = scmp.ne.s32.totalorder %s24, %s27
      %p36 = scmp.eq.s32.totalorder %s19, 1
      %p37 = por %p35, %p36
      %p38 = scmp.ne.s32.totalorder %s27, %s28
      %p39 = scmp.eq.s32.totalorder %s19, 0
      %p40 = por %p38, %p39
      %p41 = scmp.ne.s32.totalorder %s27, %s28
      %p42 = scmp.eq.s32.totalorder %s20, 1
      %p43 = por %p41, %p42
      %p45 = scmp.ne.s32.totalorder %s28, %s44
      %p46 = scmp.eq.s32.totalorder %s20, 0
      %p47 = por %p45, %p46
      %s49 = sadd.s32 %s48, 1
      %p52 = scmp.eq.s32.totalorder %s14, 1
      %p53 = scmp.ne.s32.totalorder %s48, %s50
      %p54 = scmp.eq.s32.totalorder %s14, 0
      %p55 = por %p53, %p54
      %p56 = scmp.ne.s32.totalorder %s48, %s50
      %p57 = scmp.eq.s32.totalorder %s19, 1
      %p58 = por %p56, %p57
      %p59 = scmp.ne.s32.totalorder %s50, %s51
      %p60 = scmp.eq.s32.totalorder %s19, 0
      %p61 = por %p59, %p60
      %p62 = scmp.ne.s32.totalorder %s50, %s51
      %p63 = scmp.eq.s32.totalorder %s20, 1
      %p64 = por %p62, %p63
      %p66 = scmp.ne.s32.totalorder %s51, %s65
      %p67 = scmp.eq.s32.totalorder %s20, 0
      %p68 = por %p66, %p67
      %s70 = sadd.s32 %s69, 1
      %p73 = scmp.eq.s32.totalorder %s14, 1
      %p74 = scmp.ne.s32.totalorder %s69, %s71
      %p75 = scmp.eq.s32.totalorder %s14, 0
      %p76 = por %p74, %p75
      %p77 = scmp.ne.s32.totalorder %s69, %s71
      %p78 = scmp.eq.s32.totalorder %s19, 1
      %p79 = por %p77, %p78
      %p80 = scmp.ne.s32.totalorder %s71, %s72
      %p81 = scmp.eq.s32.totalorder %s19, 0
      %p82 = por %p80, %p81
      %p83 = scmp.ne.s32.totalorder %s71, %s72
      %p84 = scmp.eq.s32.totalorder %s20, 1
      %p85 = por %p83, %p84
      %p87 = scmp.ne.s32.totalorder %s72, %s86
      %p88 = scmp.eq.s32.totalorder %s20, 0
      %p89 = por %p87, %p88
      %s91 = sadd.s32 %s90, 1
      %p94 = scmp.eq.s32.totalorder %s14, 1
      %p95 = scmp.ne.s32.totalorder %s90, %s92
      %p96 = scmp.eq.s32.totalorder %s14, 0
      %p97 = por %p95, %p96
      %p98 = scmp.ne.s32.totalorder %s90, %s92
      %p99 = scmp.eq.s32.totalorder %s19, 1
      %p100 = por %p98, %p99
      %p101 = scmp.ne.s32.totalorder %s92, %s93
      %p102 = scmp.eq.s32.totalorder %s19, 0
      %p103 = por %p101, %p102
      %p104 = scmp.ne.s32.totalorder %s92, %s93
      %p105 = scmp.eq.s32.totalorder %s20, 1
      %p106 = por %p104, %p105
      %p108 = scmp.ne.s32.totalorder %s93, %s107
      %p109 = scmp.eq.s32.totalorder %s20, 0
      %p110 = por %p108, %p109
      %s112 = sadd.s32 %s111, 1
      %p115 = scmp.eq.s32.totalorder %s14, 1
      %p116 = scmp.ne.s32.totalorder %s111, %s113
      %p117 = scmp.eq.s32.totalorder %s14, 0
      %p118 = por %p116, %p117
      %p119 = scmp.ne.s32.totalorder %s111, %s113
      %p120 = scmp.eq.s32.totalorder %s19, 1
      %p121 = por %p119, %p120
      %p122 = scmp.ne.s32.totalorder %s113, %s114
      %p123 = scmp.eq.s32.totalorder %s19, 0
      %p124 = por %p122, %p123
      %p125 = scmp.ne.s32.totalorder %s113, %s114
      %p126 = scmp.eq.s32.totalorder %s20, 1
      %p127 = por %p125, %p126
      %p129 = scmp.ne.s32.totalorder %s114, %s128
      %p130 = scmp.eq.s32.totalorder %s20, 0
      %p131 = por %p129, %p130
      %s132 = ssub.s32 %s14, %s21
      %p133 = scmp.eq.s32.totalorder %s132, 0
      %s135 = sadd.s32 %s134, 1
      %s136 = scalar_select %p133, %s134, %s135
      %p139 = pneg %p133
      %p140 = scmp.eq.s32.totalorder %s14, 1
      %p141 = por %p139, %p140
      %p142 = scmp.ne.s32.totalorder %s134, %s137
      %p143 = scmp.eq.s32.totalorder %s14, 0
      %p144 = por %p142, %p143
      %p145 = scmp.ne.s32.totalorder %s134, %s137
      %p146 = scmp.eq.s32.totalorder %s19, 1
      %p147 = por %p145, %p146
      %p148 = scmp.ne.s32.totalorder %s137, %s138
      %p149 = scmp.eq.s32.totalorder %s19, 0
      %p150 = por %p148, %p149
      %p151 = scmp.ne.s32.totalorder %s137, %s138
      %p152 = scmp.eq.s32.totalorder %s20, 1
      %p153 = por %p151, %p152
      %p155 = scmp.ne.s32.totalorder %s138, %s154
      %p156 = scmp.eq.s32.totalorder %s20, 0
      %p157 = por %p155, %p156
      %p158 = scmp.le.s32.totalorder 1, %s14
      %p159 = scmp.lt.s32.totalorder %s14, 3
      %p160 = pnand %p158, %p159
      %p161 = pneg %p160
      // Predicated region
      $region9: #{tpu_custom_call.1} parent=5 // pred_check
        _
      $region10: #{tpu_custom_call.1} parent=5 // pred_check_branch
        %163 = sbr.rel (%p160) target = $region12
      $region11: #{tpu_custom_call.1} parent=5 // pred_region
        %s164 = ssub.s32 %s14, 1
        // Predicated region
        $region13: #{tpu_custom_call.1} parent=11 // pred_check
          %p165 = pneg %p61
        $region14: #{tpu_custom_call.1} parent=11 // pred_check_branch
          %167 = sbr.rel (%p165) target = $region16
        $region15: #{tpu_custom_call.1} parent=11 // pred_region
          _
        $region16: #{tpu_custom_call.1} parent=11 // pred_fallthru
          _
        // Predicated region
        $region17: #{tpu_custom_call.1} parent=11 // pred_check
          %p168 = pneg %p82
        $region18: #{tpu_custom_call.1} parent=11 // pred_check_branch
          %170 = sbr.rel (%p168) target = $region20
        $region19: #{tpu_custom_call.1} parent=11 // pred_region
          _
        $region20: #{tpu_custom_call.1} parent=11 // pred_fallthru
          _
        // Predicated region
        $region21: #{tpu_custom_call.1} parent=11 // pred_check
          %p171 = pneg %p103
        $region22: #{tpu_custom_call.1} parent=11 // pred_check_branch
          %173 = sbr.rel (%p171) target = $region24
        $region23: #{tpu_custom_call.1} parent=11 // pred_region
          _
        $region24: #{tpu_custom_call.1} parent=11 // pred_fallthru
          _
        // Predicated region
        $region25: #{tpu_custom_call.1} parent=11 // pred_check
          %p174 = pneg %p124
        $region26: #{tpu_custom_call.1} parent=11 // pred_check_branch
          %176 = sbr.rel (%p174) target = $region28
        $region27: #{tpu_custom_call.1} parent=11 // pred_region
          _
        $region28: #{tpu_custom_call.1} parent=11 // pred_fallthru
          _
      $region12: #{tpu_custom_call.1} parent=5 // pred_fallthru
        _
      %p177 = scmp.lt.s32.totalorder %s14, 2
      // Predicated region
      $region29: #{tpu_custom_call.1} parent=5 // pred_check
        %p178 = pneg %p177
      $region30: #{tpu_custom_call.1} parent=5 // pred_check_branch
        %180 = sbr.rel (%p178) target = $region32
      $region31: #{tpu_custom_call.1} parent=5 // pred_region
        // Predicated region
        $region33: #{tpu_custom_call.1} parent=31 // pred_check
          %p181 = pneg %p34
        $region34: #{tpu_custom_call.1} parent=31 // pred_check_branch
          %183 = sbr.rel (%p181) target = $region36
        $region35: #{tpu_custom_call.1} parent=31 // pred_region
          %s184 = smul.u32 8, %s14
          %p185 = scmp.lt.s32.totalorder %s184, 15
          %s186 = scalar_select %p185, %s184, 15
          %s187 = smul.addr %s186, 8
          %s188 = scalar_lea.vmem %s0, %s187
          %s189 = smul.u32 8, %s14
        $region36: #{tpu_custom_call.1} parent=31 // pred_fallthru
          _
      $region32: #{tpu_custom_call.1} parent=5 // pred_fallthru
        _
      %p190 = scmp.le.s32.totalorder 1, %s14
      %p191 = scmp.lt.s32.totalorder %s14, 3
      %p192 = pnand %p190, %p191
      %p193 = pneg %p192
      // Predicated region
      $region37: #{tpu_custom_call.1} parent=5 // pred_check
        _
      $region38: #{tpu_custom_call.1} parent=5 // pred_check_branch
        %195 = sbr.rel (%p192) target = $region40
      $region39: #{tpu_custom_call.1} parent=5 // pred_region
        %s196 = ssub.s32 %s14, 1
        %s197 = smul.u32 8, %s19
        %p198 = scmp.lt.s32.totalorder %s197, 15
        %s199 = scalar_select %p198, %s197, 15
        %s200 = smul.addr %s199, 8
        %s201 = scalar_lea.vmem %s0, %s200
        %p202 = pneg %p40
        %p203 = pneg %p37
        %p204 = pneg %p61
        %p205 = pneg %p58
        %p206 = pneg %p82
        %p207 = pneg %p79
        %p208 = pneg %p103
        %p209 = pneg %p100
        %p210 = pneg %p124
        %p211 = pneg %p121
        %p212 = pneg %p150
        %p213 = pneg %p147
        %s214 = sand.u32 %s137, 1
        %s215 = scalar_lea.sflag [#allocation4], %s214
        %s216 = sand.u32 %s137, 1
        %s217 = smul.addr %s216, 64
        %s218 = scalar_lea.vmem [#allocation3], %s217
        %s219 = smul.u32 8, %s19
        %p220 = scmp.lt.s32.totalorder %s219, 15
        %s221 = scalar_select %p220, %s219, 15
        %s222 = smul.addr %s221, 8
        %s223 = scalar_lea.vmem %s0, %s222
        %s224 = smul.u32 8, %s19
        %s225 = smul.u32 8, %s19
        %v227 = vld [vmem:[%s223] sm:$0xff]
        %v228 = vld [vmem:[%s223 + $0x8] sm:$0xff]
        %v229 = vld [vmem:[%s223 + $0x10] sm:$0xff]
        %v230 = vld [vmem:[%s223 + $0x18] sm:$0xff]
        %v231 = vld [vmem:[%s223 + $0x20] sm:$0xff]
        %v232 = vld [vmem:[%s223 + $0x28] sm:$0xff]
        %v233 = vld [vmem:[%s223 + $0x30] sm:$0xff]
        %v234 = vld [vmem:[%s223 + $0x38] sm:$0xff]
        %v235 = vpack.c.bf16 %v228, %v227
        %v236 = vpack.c.bf16 %v230, %v229
        %v237 = vpack.c.bf16 %v232, %v231
        %v238 = vpack.c.bf16 %v234, %v233
        %v239 = vld [vmem:[%s1] sm:$0xf]
        %v240 = vld [vmem:[%s1 + $0x4] sm:$0xf]
        %v241 = vld [vmem:[%s1 + $0x8] sm:$0xf]
        %v242 = vld [vmem:[%s1 + $0xc] sm:$0xf]
        %v243 = vld [vmem:[%s2] sm:$0x1]
        %v245 = vlaneseq
        %v246 = vshrl.u32 %v245, 7
        %v247 = vsub.s32 0, %v246
        %v248 = vrot.slane %v243, %v247
        %v254 = vunpack.c.l.b16 %v239
        %v255 = vunpack.c.l.b16 %v240
        %v256 = vunpack.c.l.b16 %v241
        %v257 = vunpack.c.l.b16 %v242
        %v258 = vpack.c.b16 %v255, %v254
        %v259 = vpack.c.b16 %v257, %v256
        %vm262 = vcmask 261120
        %v264 = vsel %vm262, %v235, 0
        %v267 = vsel %vm262, %v236, 0
        %v270 = vsel %vm262, %v237, 0
        %v273 = vsel %vm262, %v238, 0
        %275 = vmatprep.subr.bf16.mxu0 0
        %276 = vmatpush1.bf16.msra.mxu0 %v258
        %277 = vmatprep.subr.bf16.mxu0 0
        %278 = vmatpush1.bf16.msra.mxu0 %v259
        %279 = vmatprep.subr.bf16.mxu0 0
        %280 = vmatpush1.bf16.msra.mxu0 0
        %281 = vmatprep.subr.bf16.mxu0 0
        %282 = vmatpush1.bf16.msra.mxu0 0
        %283 = vmatprep.subr.bf16.mxu0 0
        %284 = vmatpush1.bf16.msra.mxu0 0
        %285 = vmatprep.subr.bf16.mxu0 0
        %286 = vmatpush1.bf16.msra.mxu0 0
        %287 = vmatprep.subr.bf16.mxu0 0
        %288 = vmatpush1.bf16.msra.mxu0 0
        %289 = vmatprep.subr.bf16.mxu0 0
        %290 = vmatpush1.bf16.msra.mxu0 0
        %291 = vmatprep.subr.bf16.mxu0 0
        %292 = vmatpush1.bf16.msra.mxu0 0
        %293 = vmatprep.subr.bf16.mxu0 0
        %294 = vmatpush1.bf16.msra.mxu0 0
        %295 = vmatprep.subr.bf16.mxu0 0
        %296 = vmatpush1.bf16.msra.mxu0 0
        %297 = vmatprep.subr.bf16.mxu0 0
        %298 = vmatpush1.bf16.msra.mxu0 0
        %299 = vmatprep.subr.bf16.mxu0 0
        %300 = vmatpush1.bf16.msra.mxu0 0
        %301 = vmatprep.subr.bf16.mxu0 0
        %302 = vmatpush1.bf16.msra.mxu0 0
        %303 = vmatprep.subr.bf16.mxu0 0
        %304 = vmatpush1.bf16.msra.mxu0 0
        %305 = vmatprep.subr.bf16.mxu0 0
        %306 = vmatpush1.bf16.msra.mxu0 0
        %307 = vmatprep.mubr.bf16.mxu0 0
        %308 = vmatmul.mubr.bf16.gmra.mrb[0].mxu0 %v264
        %v309 = vpop.f32.mrb[0].mxu0
        %v310 = vadd.f32 %v248, %v309
        %v311 = vpop.f32.mrb[0].mxu0
        %v312 = vpop.f32.mrb[0].mxu0
        %v313 = vadd.f32 %v248, %v312
        %v314 = vpop.f32.mrb[0].mxu0
        %315 = vmatprep.mubr.bf16.mxu0 0
        %316 = vmatmul.mubr.bf16.gmra.mrb[0].mxu0 %v267
        %v317 = vpop.f32.mrb[0].mxu0
        %v318 = vadd.f32 %v248, %v317
        %v319 = vpop.f32.mrb[0].mxu0
        %v320 = vpop.f32.mrb[0].mxu0
        %v321 = vadd.f32 %v248, %v320
        %v322 = vpop.f32.mrb[0].mxu0
        %323 = vmatprep.mubr.bf16.mxu0 0
        %324 = vmatmul.mubr.bf16.gmra.mrb[0].mxu0 %v270
        %v325 = vpop.f32.mrb[0].mxu0
        %v326 = vadd.f32 %v248, %v325
        %v327 = vpop.f32.mrb[0].mxu0
        %v328 = vpop.f32.mrb[0].mxu0
        %v329 = vadd.f32 %v248, %v328
        %v330 = vpop.f32.mrb[0].mxu0
        %331 = vmatprep.mubr.bf16.mxu0 0
        %332 = vmatmul.mubr.bf16.gmra.mrb[0].mxu0 %v273
        %v333 = vpop.f32.mrb[0].mxu0
        %v334 = vadd.f32 %v248, %v333
        %v335 = vpop.f32.mrb[0].mxu0
        %v336 = vpop.f32.mrb[0].mxu0
        %v337 = vadd.f32 %v248, %v336
        %v338 = vpop.f32.mrb[0].mxu0
        %339 = vdwg.mxu0
        %v340 = vmax.f32 %v310, 0.0
        %v341 = vmax.f32 %v313, 0.0
        %v342 = vmax.f32 %v318, 0.0
        %v343 = vmax.f32 %v321, 0.0
        %v344 = vmax.f32 %v326, 0.0
        %v345 = vmax.f32 %v329, 0.0
        %v346 = vmax.f32 %v334, 0.0
        %v347 = vmax.f32 %v337, 0.0
        %v348 = vpack.c.bf16 %v341, %v340
        %v349 = vpack.c.bf16 %v343, %v342
        %v350 = vpack.c.bf16 %v345, %v344
        %v351 = vpack.c.bf16 %v347, %v346
        %352 = vst [vmem:[#allocation2] sm:$0xff] %v348
        %353 = vst [vmem:[#allocation2 + $0x8] sm:$0xff] %v349
        %354 = vst [vmem:[#allocation2 + $0x10] sm:$0xff] %v350
        %355 = vst [vmem:[#allocation2 + $0x18] sm:$0xff] %v351
        %v356 = vld [vmem:[#allocation2] sm:$0xff]
        %v357 = vld [vmem:[#allocation2 + $0x8] sm:$0xff]
        %v358 = vld [vmem:[#allocation2 + $0x10] sm:$0xff]
        %v359 = vld [vmem:[#allocation2 + $0x18] sm:$0xff]
        %v360 = vld [vmem:[%s3] sm:$0xf]
        %v361 = vld [vmem:[%s3 + $0x4] sm:$0xf]
        %v362 = vld [vmem:[%s3 + $0x8] sm:$0xf]
        %v363 = vld [vmem:[%s3 + $0xc] sm:$0xf]
        %v364 = vld [vmem:[%s3 + $0x10] sm:$0xf]
        %v365 = vld [vmem:[%s3 + $0x14] sm:$0xf]
        %v366 = vld [vmem:[%s3 + $0x18] sm:$0xf]
        %v367 = vld [vmem:[%s3 + $0x1c] sm:$0xf]
        %v368 = vld [vmem:[%s3 + $0x20] sm:$0xf]
        %v369 = vld [vmem:[%s3 + $0x24] sm:$0xf]
        %v370 = vld [vmem:[%s3 + $0x28] sm:$0xf]
        %v371 = vld [vmem:[%s3 + $0x2c] sm:$0xf]
        %v372 = vld [vmem:[%s3 + $0x30] sm:$0xf]
        %v373 = vld [vmem:[%s3 + $0x34] sm:$0xf]
        %v374 = vld [vmem:[%s3 + $0x38] sm:$0xf]
        %v375 = vld [vmem:[%s3 + $0x3c] sm:$0xf]
        %v376 = vld [vmem:[%s4] sm:$0x1]
        %v378 = vlaneseq
        %v379 = vshrl.u32 %v378, 7
        %v380 = vsub.s32 0, %v379
        %v381 = vrot.slane %v376, %v380
        %v399 = vunpack.c.l.b16 %v360
        %v400 = vunpack.c.l.b16 %v361
        %v401 = vunpack.c.l.b16 %v362
        %v402 = vunpack.c.l.b16 %v363
        %v403 = vunpack.c.l.b16 %v364
        %v404 = vunpack.c.l.b16 %v365
        %v405 = vunpack.c.l.b16 %v366
        %v406 = vunpack.c.l.b16 %v367
        %v407 = vunpack.c.l.b16 %v368
        %v408 = vunpack.c.l.b16 %v369
        %v409 = vunpack.c.l.b16 %v370
        %v410 = vunpack.c.l.b16 %v371
        %v411 = vunpack.c.l.b16 %v372
        %v412 = vunpack.c.l.b16 %v373
        %v413 = vunpack.c.l.b16 %v374
        %v414 = vunpack.c.l.b16 %v375
        %v415 = vpack.c.b16 %v400, %v399
        %v416 = vpack.c.b16 %v402, %v401
        %v417 = vpack.c.b16 %v404, %v403
        %v418 = vpack.c.b16 %v406, %v405
        %v419 = vpack.c.b16 %v408, %v407
        %v420 = vpack.c.b16 %v410, %v409
        %v421 = vpack.c.b16 %v412, %v411
        %v422 = vpack.c.b16 %v414, %v413
        %431 = vmatprep.subr.bf16.mxu0 0
        %432 = vmatpush1.bf16.msra.mxu0 %v415
        %433 = vmatprep.subr.bf16.mxu0 0
        %434 = vmatpush1.bf16.msra.mxu0 %v416
        %435 = vmatprep.subr.bf16.mxu0 0
        %436 = vmatpush1.bf16.msra.mxu0 %v417
        %437 = vmatprep.subr.bf16.mxu0 0
        %438 = vmatpush1.bf16.msra.mxu0 %v418
        %439 = vmatprep.subr.bf16.mxu0 0
        %440 = vmatpush1.bf16.msra.mxu0 %v419
        %441 = vmatprep.subr.bf16.mxu0 0
        %442 = vmatpush1.bf16.msra.mxu0 %v420
        %443 = vmatprep.subr.bf16.mxu0 0
        %444 = vmatpush1.bf16.msra.mxu0 %v421
        %445 = vmatprep.subr.bf16.mxu0 0
        %446 = vmatpush1.bf16.msra.mxu0 %v422
        %447 = vmatprep.subr.bf16.mxu0 0
        %448 = vmatpush1.bf16.msra.mxu0 0
        %449 = vmatprep.subr.bf16.mxu0 0
        %450 = vmatpush1.bf16.msra.mxu0 0
        %451 = vmatprep.subr.bf16.mxu0 0
        %452 = vmatpush1.bf16.msra.mxu0 0
        %453 = vmatprep.subr.bf16.mxu0 0
        %454 = vmatpush1.bf16.msra.mxu0 0
        %455 = vmatprep.subr.bf16.mxu0 0
        %456 = vmatpush1.bf16.msra.mxu0 0
        %457 = vmatprep.subr.bf16.mxu0 0
        %458 = vmatpush1.bf16.msra.mxu0 0
        %459 = vmatprep.subr.bf16.mxu0 0
        %460 = vmatpush1.bf16.msra.mxu0 0
        %461 = vmatprep.subr.bf16.mxu0 0
        %462 = vmatpush1.bf16.msra.mxu0 0
        %463 = vmatprep.mubr.bf16.mxu0 0
        %464 = vmatmul.mubr.bf16.gmra.mrb[0].mxu0 %v356
        %v465 = vpop.f32.mrb[0].mxu0
        %v466 = vadd.f32 %v381, %v465
        %v467 = vpop.f32.mrb[0].mxu0
        %v468 = vpop.f32.mrb[0].mxu0
        %v469 = vadd.f32 %v381, %v468
        %v470 = vpop.f32.mrb[0].mxu0
        %471 = vmatprep.mubr.bf16.mxu0 0
        %472 = vmatmul.mubr.bf16.gmra.mrb[0].mxu0 %v357
        %v473 = vpop.f32.mrb[0].mxu0
        %v474 = vadd.f32 %v381, %v473
        %v475 = vpop.f32.mrb[0].mxu0
        %v476 = vpop.f32.mrb[0].mxu0
        %v477 = vadd.f32 %v381, %v476
        %v478 = vpop.f32.mrb[0].mxu0
        %479 = vmatprep.mubr.bf16.mxu0 0
        %480 = vmatmul.mubr.bf16.gmra.mrb[0].mxu0 %v358
        %v481 = vpop.f32.mrb[0].mxu0
        %v482 = vadd.f32 %v381, %v481
        %v483 = vpop.f32.mrb[0].mxu0
        %v484 = vpop.f32.mrb[0].mxu0
        %v485 = vadd.f32 %v381, %v484
        %v486 = vpop.f32.mrb[0].mxu0
        %487 = vmatprep.mubr.bf16.mxu0 0
        %488 = vmatmul.mubr.bf16.gmra.mrb[0].mxu0 %v359
        %v489 = vpop.f32.mrb[0].mxu0
        %v490 = vadd.f32 %v381, %v489
        %v491 = vpop.f32.mrb[0].mxu0
        %v492 = vpop.f32.mrb[0].mxu0
        %v493 = vadd.f32 %v381, %v492
        %v494 = vpop.f32.mrb[0].mxu0
        %495 = vdwg.mxu0
        %496 = vst [vmem:[%s218] sm:$0xff] %v466
        %497 = vst [vmem:[%s218 + $0x8] sm:$0xff] %v469
        %498 = vst [vmem:[%s218 + $0x10] sm:$0xff] %v474
        %499 = vst [vmem:[%s218 + $0x18] sm:$0xff] %v477
        %500 = vst [vmem:[%s218 + $0x20] sm:$0xff] %v482
        %501 = vst [vmem:[%s218 + $0x28] sm:$0xff] %v485
        %502 = vst [vmem:[%s218 + $0x30] sm:$0xff] %v490
        %503 = vst [vmem:[%s218 + $0x38] sm:$0xff] %v493
        %s504 = sand.u32 %s137, 1
        %s505 = scalar_lea.sflag [#allocation4], %s504
        %s506 = sand.u32 %s137, 1
        %s507 = smul.addr %s506, 64
        %s508 = scalar_lea.vmem [#allocation3], %s507
        // Predicated region
        $region41: #{tpu_custom_call.1} parent=39 // pred_check
          %p509 = pneg %p147
        $region42: #{tpu_custom_call.1} parent=39 // pred_check_branch
          %511 = sbr.rel (%p509) target = $region44
        $region43: #{tpu_custom_call.1} parent=39 // pred_region
          %s512 = smul.u32 8, %s19
          %s514 = ssub.s32 1024, 1024
          %515 = vsyncadd %s505, %s514
          %s516 = smul.addr %s512, 128
          %s517 = scalar_lea.hbm %s5, %s516
          %s518 = sshll.u32 %s508, 4
          %s519 = int_to_ptr.vmem [resolvable:$true] %s518
          %524 = dma.vmem_to_hbm [thread:$0]  %s519, 1024, %s517, %s505, 128, 128, 8
        $region44: #{tpu_custom_call.1} parent=39 // pred_fallthru
          _
      $region40: #{tpu_custom_call.1} parent=5 // pred_fallthru
        _
      %p525 = scmp.le.s32.totalorder 2, %s14
      // Predicated region
      $region45: #{tpu_custom_call.1} parent=5 // pred_check
        %p526 = pneg %p525
      $region46: #{tpu_custom_call.1} parent=5 // pred_check_branch
        %528 = sbr.rel (%p526) target = $region48
      $region47: #{tpu_custom_call.1} parent=5 // pred_region
        %s529 = ssub.s32 %s14, 2
        // Predicated region
        $region49: #{tpu_custom_call.1} parent=47 // pred_check
          %p530 = pneg %p153
        $region50: #{tpu_custom_call.1} parent=47 // pred_check_branch
          %532 = sbr.rel (%p530) target = $region52
        $region51: #{tpu_custom_call.1} parent=47 // pred_region
          %s533 = sand.u32 %s138, 1
          %s534 = scalar_lea.sflag [#allocation4], %s533
          %s535 = sand.u32 %s138, 1
          %s536 = smul.addr %s535, 64
          %s537 = scalar_lea.vmem [#allocation3], %s536
          %538 = dma.done %s534, 1024
        $region52: #{tpu_custom_call.1} parent=47 // pred_fallthru
          _
      $region48: #{tpu_custom_call.1} parent=5 // pred_fallthru
        _
    $region6: #{tpu_custom_call.1} parent=1 // loop_footer
      %s18 = sadd.s32 1, %s14
    $region7: #{tpu_custom_call.1} parent=1 // loop_footer_branch
      %13 = sbr.rel target = $region3
    $region8: #{tpu_custom_call.1} parent=1 // loop_exit
      _
    %539 = vsyncpa [#allocation4], 1
    %s540 = scalar_lea.sflag [#allocation4], 1
    %541 = vsyncpa %s540, 1

// kernel: tpu_custom_call.1
$region0: #{tpu_custom_call.1}
  #allocation0 [shape = 'u32[]', space=smem, size = 0x4, offset = 0x4, fixed_abs, tag = 'smem constant byte address 0x4 - core index']
  #allocation1 [shape = 'u32[144,128]{1,0:T(1,128)}', space=vmem, size = 0x12000, scoped, tag = 'internal scratch']
  #allocation2 [shape = 'bf16[64,128]{1,0:T(16,128)(2,1)}', space=vmem, size = 0x4000, scoped, tag = 'scratch operand']
  %s0 = inlined_call_operand.vmem [shape: f32[128,32], index: 0, kind: input, shape index: {}]
  %s1 = inlined_call_operand.vmem [shape: bf16[32,128], index: 1, kind: input, shape index: {}]
  %s2 = inlined_call_operand.vmem [shape: f32[1,128], index: 2, kind: input, shape index: {}]
  %s3 = inlined_call_operand.vmem [shape: bf16[128,128], index: 3, kind: input, shape index: {}]
  %s4 = inlined_call_operand.vmem [shape: f32[1,128], index: 4, kind: input, shape index: {}]
  %s5 = inlined_call_operand.hbm [shape: f32[128,128], index: 5, kind: output, shape index: {}]
  %s6 = sld [smem:[#allocation0]]
  $region53: #{tpu_custom_call.1} parent=0
    _
  %s8 = ssub.s32 1, %s6
  %s9 = scalar_select 0, %s8, %s6
  $region1: #{tpu_custom_call.1} parent=0
    #allocation3 [shape = 'u8[65536]{0}', space=vmem, size = 0x10000, scoped, tag = 'output window, operand 0']
    #allocation4 [shape = 's32[2]{0}', space=sflag, size = 0x8, scoped, tag = 'scoped memory for tpu_custom_call.1']
    %10 = vsyncpa [#allocation4], 0
    %s11 = scalar_lea.sflag [#allocation4], 1
    %12 = vsyncpa %s11, 0
    loop: start=0, step=1, limit=4
    $region2: #{tpu_custom_call.1} parent=1 // loop_pre_header
      _
    $region3: #{tpu_custom_call.1} parent=1 // loop_header
      %s14 = sphi 0, %s18
      %p15 = scmp.ge.s32.totalorder %s14, 4
      %s24 = sphi 0, %s26
      %s27 = sphi 0, %s24
      %s28 = sphi 0, %s27
      %s44 = sphi 0, %s28
      %s48 = sphi 0, %s48
      %s50 = sphi 0, %s48
      %s51 = sphi 0, %s50
      %s65 = sphi 0, %s51
      %s69 = sphi 0, %s69
      %s71 = sphi 0, %s69
      %s72 = sphi 0, %s71
      %s86 = sphi 0, %s72
      %s90 = sphi 0, %s90
      %s92 = sphi 0, %s90
      %s93 = sphi 0, %s92
      %s107 = sphi 0, %s93
      %s111 = sphi 0, %s111
      %s113 = sphi 0, %s111
      %s114 = sphi 0, %s113
      %s128 = sphi 0, %s114
      %s134 = sphi 0, %s136
      %s137 = sphi 0, %s134
      %s138 = sphi 0, %s137
      %s154 = sphi 0, %s138
    $region4: #{tpu_custom_call.1} parent=1 // loop_header_branch
      %17 = sbr.rel (%p15) target = $region8
    $region5: #{tpu_custom_call.1} parent=1 // loop_body
      %s19 = ssub.s32 %s14, 1
      %s20 = ssub.s32 %s14, 2
      %s21 = sadd.s32 %s14, 1
      %s22 = ssub.s32 %s14, %s21
      %p23 = scmp.eq.s32.totalorder %s22, 0
      %s25 = sadd.s32 %s24, 1
      %s26 = scalar_select %p23, %s24, %s25
      %p29 = pneg %p23
      %p30 = scmp.eq.s32.totalorder %s14, 1
      %p31 = por %p29, %p30
      %p32 = scmp.ne.s32.totalorder %s24, %s27
      %p33 = scmp.eq.s32.totalorder %s14, 0
      %p34 = por %p32, %p33
      %p35 = scmp.ne.s32.totalorder %s24, %s27
      %p36 = scmp.eq.s32.totalorder %s19, 1
      %p37 = por %p35, %p36
      %p38 = scmp.ne.s32.totalorder %s27, %s28
      %p39 = scmp.eq.s32.totalorder %s19, 0
      %p40 = por %p38, %p39
      %p41 = scmp.ne.s32.totalorder %s27, %s28
      %p42 = scmp.eq.s32.totalorder %s20, 1
      %p43 = por %p41, %p42
      %p45 = scmp.ne.s32.totalorder %s28, %s44
      %p46 = scmp.eq.s32.totalorder %s20, 0
      %p47 = por %p45, %p46
      %s49 = sadd.s32 %s48, 1
      %p52 = scmp.eq.s32.totalorder %s14, 1
      %p53 = scmp.ne.s32.totalorder %s48, %s50
      %p54 = scmp.eq.s32.totalorder %s14, 0
      %p55 = por %p53, %p54
      %p56 = scmp.ne.s32.totalorder %s48, %s50
      %p57 = scmp.eq.s32.totalorder %s19, 1
      %p58 = por %p56, %p57
      %p59 = scmp.ne.s32.totalorder %s50, %s51
      %p60 = scmp.eq.s32.totalorder %s19, 0
      %p61 = por %p59, %p60
      %p62 = scmp.ne.s32.totalorder %s50, %s51
      %p63 = scmp.eq.s32.totalorder %s20, 1
      %p64 = por %p62, %p63
      %p66 = scmp.ne.s32.totalorder %s51, %s65
      %p67 = scmp.eq.s32.totalorder %s20, 0
      %p68 = por %p66, %p67
      %s70 = sadd.s32 %s69, 1
      %p73 = scmp.eq.s32.totalorder %s14, 1
      %p74 = scmp.ne.s32.totalorder %s69, %s71
      %p75 = scmp.eq.s32.totalorder %s14, 0
      %p76 = por %p74, %p75
      %p77 = scmp.ne.s32.totalorder %s69, %s71
      %p78 = scmp.eq.s32.totalorder %s19, 1
      %p79 = por %p77, %p78
      %p80 = scmp.ne.s32.totalorder %s71, %s72
      %p81 = scmp.eq.s32.totalorder %s19, 0
      %p82 = por %p80, %p81
      %p83 = scmp.ne.s32.totalorder %s71, %s72
      %p84 = scmp.eq.s32.totalorder %s20, 1
      %p85 = por %p83, %p84
      %p87 = scmp.ne.s32.totalorder %s72, %s86
      %p88 = scmp.eq.s32.totalorder %s20, 0
      %p89 = por %p87, %p88
      %s91 = sadd.s32 %s90, 1
      %p94 = scmp.eq.s32.totalorder %s14, 1
      %p95 = scmp.ne.s32.totalorder %s90, %s92
      %p96 = scmp.eq.s32.totalorder %s14, 0
      %p97 = por %p95, %p96
      %p98 = scmp.ne.s32.totalorder %s90, %s92
      %p99 = scmp.eq.s32.totalorder %s19, 1
      %p100 = por %p98, %p99
      %p101 = scmp.ne.s32.totalorder %s92, %s93
      %p102 = scmp.eq.s32.totalorder %s19, 0
      %p103 = por %p101, %p102
      %p104 = scmp.ne.s32.totalorder %s92, %s93
      %p105 = scmp.eq.s32.totalorder %s20, 1
      %p106 = por %p104, %p105
      %p108 = scmp.ne.s32.totalorder %s93, %s107
      %p109 = scmp.eq.s32.totalorder %s20, 0
      %p110 = por %p108, %p109
      %s112 = sadd.s32 %s111, 1
      %p115 = scmp.eq.s32.totalorder %s14, 1
      %p116 = scmp.ne.s32.totalorder %s111, %s113
      %p117 = scmp.eq.s32.totalorder %s14, 0
      %p118 = por %p116, %p117
      %p119 = scmp.ne.s32.totalorder %s111, %s113
      %p120 = scmp.eq.s32.totalorder %s19, 1
      %p121 = por %p119, %p120
      %p122 = scmp.ne.s32.totalorder %s113, %s114
      %p123 = scmp.eq.s32.totalorder %s19, 0
      %p124 = por %p122, %p123
      %p125 = scmp.ne.s32.totalorder %s113, %s114
      %p126 = scmp.eq.s32.totalorder %s20, 1
      %p127 = por %p125, %p126
      %p129 = scmp.ne.s32.totalorder %s114, %s128
      %p130 = scmp.eq.s32.totalorder %s20, 0
      %p131 = por %p129, %p130
      %s132 = ssub.s32 %s14, %s21
      %p133 = scmp.eq.s32.totalorder %s132, 0
      %s135 = sadd.s32 %s134, 1
      %s136 = scalar_select %p133, %s134, %s135
      %p139 = pneg %p133
      %p140 = scmp.eq.s32.totalorder %s14, 1
      %p141 = por %p139, %p140
      %p142 = scmp.ne.s32.totalorder %s134, %s137
      %p143 = scmp.eq.s32.totalorder %s14, 0
      %p144 = por %p142, %p143
      %p145 = scmp.ne.s32.totalorder %s134, %s137
      %p146 = scmp.eq.s32.totalorder %s19, 1
      %p147 = por %p145, %p146
      %p148 = scmp.ne.s32.totalorder %s137, %s138
      %p149 = scmp.eq.s32.totalorder %s19, 0
      %p150 = por %p148, %p149
      %p151 = scmp.ne.s32.totalorder %s137, %s138
      %p152 = scmp.eq.s32.totalorder %s20, 1
      %p153 = por %p151, %p152
      %p155 = scmp.ne.s32.totalorder %s138, %s154
      %p156 = scmp.eq.s32.totalorder %s20, 0
      %p157 = por %p155, %p156
      %p158 = scmp.le.s32.totalorder 1, %s14
      %p159 = scmp.lt.s32.totalorder %s14, 3
      %p160 = pnand %p158, %p159
      %p161 = pneg %p160
      // Predicated region
      $region9: #{tpu_custom_call.1} parent=5 // pred_check
        _
      $region10: #{tpu_custom_call.1} parent=5 // pred_check_branch
        %163 = sbr.rel (%p160) target = $region12
      $region11: #{tpu_custom_call.1} parent=5 // pred_region
        %s164 = ssub.s32 %s14, 1
        // Predicated region
        $region13: #{tpu_custom_call.1} parent=11 // pred_check
          %p165 = pneg %p61
        $region14: #{tpu_custom_call.1} parent=11 // pred_check_branch
          %167 = sbr.rel (%p165) target = $region16
        $region15: #{tpu_custom_call.1} parent=11 // pred_region
          _
        $region16: #{tpu_custom_call.1} parent=11 // pred_fallthru
          _
        // Predicated region
        $region17: #{tpu_custom_call.1} parent=11 // pred_check
          %p168 = pneg %p82
        $region18: #{tpu_custom_call.1} parent=11 // pred_check_branch
          %170 = sbr.rel (%p168) target = $region20
        $region19: #{tpu_custom_call.1} parent=11 // pred_region
          _
        $region20: #{tpu_custom_call.1} parent=11 // pred_fallthru
          _
        // Predicated region
        $region21: #{tpu_custom_call.1} parent=11 // pred_check
          %p171 = pneg %p103
        $region22: #{tpu_custom_call.1} parent=11 // pred_check_branch
          %173 = sbr.rel (%p171) target = $region24
        $region23: #{tpu_custom_call.1} parent=11 // pred_region
          _
        $region24: #{tpu_custom_call.1} parent=11 // pred_fallthru
          _
        // Predicated region
        $region25: #{tpu_custom_call.1} parent=11 // pred_check
          %p174 = pneg %p124
        $region26: #{tpu_custom_call.1} parent=11 // pred_check_branch
          %176 = sbr.rel (%p174) target = $region28
        $region27: #{tpu_custom_call.1} parent=11 // pred_region
          _
        $region28: #{tpu_custom_call.1} parent=11 // pred_fallthru
          _
      $region12: #{tpu_custom_call.1} parent=5 // pred_fallthru
        _
      %p177 = scmp.lt.s32.totalorder %s14, 2
      // Predicated region
      $region29: #{tpu_custom_call.1} parent=5 // pred_check
        %p178 = pneg %p177
      $region30: #{tpu_custom_call.1} parent=5 // pred_check_branch
        %180 = sbr.rel (%p178) target = $region32
      $region31: #{tpu_custom_call.1} parent=5 // pred_region
        // Predicated region
        $region33: #{tpu_custom_call.1} parent=31 // pred_check
          %p181 = pneg %p34
        $region34: #{tpu_custom_call.1} parent=31 // pred_check_branch
          %183 = sbr.rel (%p181) target = $region36
        $region35: #{tpu_custom_call.1} parent=31 // pred_region
          %s184 = smul.u32 8, %s14
          %p185 = scmp.lt.s32.totalorder %s184, 15
          %s186 = scalar_select %p185, %s184, 15
          %s187 = smul.addr %s186, 8
          %s188 = scalar_lea.vmem %s0, %s187
          %s189 = smul.u32 8, %s14
        $region36: #{tpu_custom_call.1} parent=31 // pred_fallthru
          _
      $region32: #{tpu_custom_call.1} parent=5 // pred_fallthru
        _
      %p190 = scmp.le.s32.totalorder 1, %s14
      %p191 = scmp.lt.s32.totalorder %s14, 3
      %p192 = pnand %p190, %p191
      %p193 = pneg %p192
      // Predicated region
      $region37: #{tpu_custom_call.1} parent=5 // pred_check
        _
      $region38: #{tpu_custom_call.1} parent=5 // pred_check_branch
        %195 = sbr.rel (%p192) target = $region40
      $region39: #{tpu_custom_call.1} parent=5 // pred_region
        %s196 = ssub.s32 %s14, 1
        %s197 = smul.u32 8, %s19
        %p198 = scmp.lt.s32.totalorder %s197, 15
        %s199 = scalar_select %p198, %s197, 15
        %s200 = smul.addr %s199, 8
        %s201 = scalar_lea.vmem %s0, %s200
        %p202 = pneg %p40
        %p203 = pneg %p37
        %p204 = pneg %p61
        %p205 = pneg %p58
        %p206 = pneg %p82
        %p207 = pneg %p79
        %p208 = pneg %p103
        %p209 = pneg %p100
        %p210 = pneg %p124
        %p211 = pneg %p121
        %p212 = pneg %p150
        %p213 = pneg %p147
        %s214 = sand.u32 %s137, 1
        %s215 = scalar_lea.sflag [#allocation4], %s214
        %s216 = sand.u32 %s137, 1
        %s217 = smul.addr %s216, 64
        %s218 = scalar_lea.vmem [#allocation3], %s217
        %s219 = smul.u32 8, %s19
        %p220 = scmp.lt.s32.totalorder %s219, 15
        %s221 = scalar_select %p220, %s219, 15
        %s222 = smul.addr %s221, 8
        %s223 = scalar_lea.vmem %s0, %s222
        %s224 = smul.u32 8, %s19
        %s225 = smul.u32 8, %s19
        %v227 = vld [vmem:[%s223] sm:$0xff]
        %v228 = vld [vmem:[%s223 + $0x8] sm:$0xff]
        %v229 = vld [vmem:[%s223 + $0x10] sm:$0xff]
        %v230 = vld [vmem:[%s223 + $0x18] sm:$0xff]
        %v231 = vld [vmem:[%s223 + $0x20] sm:$0xff]
        %v232 = vld [vmem:[%s223 + $0x28] sm:$0xff]
        %v233 = vld [vmem:[%s223 + $0x30] sm:$0xff]
        %v234 = vld [vmem:[%s223 + $0x38] sm:$0xff]
        %v235 = vpack.c.bf16 %v228, %v227
        %v236 = vpack.c.bf16 %v230, %v229
        %v237 = vpack.c.bf16 %v232, %v231
        %v238 = vpack.c.bf16 %v234, %v233
        %v239 = vld [vmem:[%s1] sm:$0xf]
        %v240 = vld [vmem:[%s1 + $0x4] sm:$0xf]
        %v241 = vld [vmem:[%s1 + $0x8] sm:$0xf]
        %v242 = vld [vmem:[%s1 + $0xc] sm:$0xf]
        %v243 = vld [vmem:[%s2] sm:$0x1]
        %v245 = vlaneseq
        %v246 = vshrl.u32 %v245, 7
        %v247 = vsub.s32 0, %v246
        %v248 = vrot.slane %v243, %v247
        %v254 = vunpack.c.l.b16 %v239
        %v255 = vunpack.c.l.b16 %v240
        %v256 = vunpack.c.l.b16 %v241
        %v257 = vunpack.c.l.b16 %v242
        %v258 = vpack.c.b16 %v255, %v254
        %v259 = vpack.c.b16 %v257, %v256
        %vm262 = vcmask 261120
        %v264 = vsel %vm262, %v235, 0
        %v267 = vsel %vm262, %v236, 0
        %v270 = vsel %vm262, %v237, 0
        %v273 = vsel %vm262, %v238, 0
        %275 = vmatprep.subr.bf16.mxu0 0
        %276 = vmatpush1.bf16.msra.mxu0 %v258
        %277 = vmatprep.subr.bf16.mxu0 0
        %278 = vmatpush1.bf16.msra.mxu0 %v259
        %279 = vmatprep.subr.bf16.mxu0 0
        %280 = vmatpush1.bf16.msra.mxu0 0
        %281 = vmatprep.subr.bf16.mxu0 0
        %282 = vmatpush1.bf16.msra.mxu0 0
        %283 = vmatprep.subr.bf16.mxu0 0
        %284 = vmatpush1.bf16.msra.mxu0 0
        %285 = vmatprep.subr.bf16.mxu0 0
        %286 = vmatpush1.bf16.msra.mxu0 0
        %287 = vmatprep.subr.bf16.mxu0 0
        %288 = vmatpush1.bf16.msra.mxu0 0
        %289 = vmatprep.subr.bf16.mxu0 0
        %290 = vmatpush1.bf16.msra.mxu0 0
        %291 = vmatprep.subr.bf16.mxu0 0
        %292 = vmatpush1.bf16.msra.mxu0 0
        %293 = vmatprep.subr.bf16.mxu0 0
        %294 = vmatpush1.bf16.msra.mxu0 0
        %295 = vmatprep.subr.bf16.mxu0 0
        %296 = vmatpush1.bf16.msra.mxu0 0
        %297 = vmatprep.subr.bf16.mxu0 0
        %298 = vmatpush1.bf16.msra.mxu0 0
        %299 = vmatprep.subr.bf16.mxu0 0
        %300 = vmatpush1.bf16.msra.mxu0 0
        %301 = vmatprep.subr.bf16.mxu0 0
        %302 = vmatpush1.bf16.msra.mxu0 0
        %303 = vmatprep.subr.bf16.mxu0 0
        %304 = vmatpush1.bf16.msra.mxu0 0
        %305 = vmatprep.subr.bf16.mxu0 0
        %306 = vmatpush1.bf16.msra.mxu0 0
        %307 = vmatprep.mubr.bf16.mxu0 0
        %308 = vmatmul.mubr.bf16.gmra.mrb[0].mxu0 %v264
        %v309 = vpop.f32.mrb[0].mxu0
        %v310 = vadd.f32 %v248, %v309
        %v311 = vpop.f32.mrb[0].mxu0
        %v312 = vpop.f32.mrb[0].mxu0
        %v313 = vadd.f32 %v248, %v312
        %v314 = vpop.f32.mrb[0].mxu0
        %315 = vmatprep.mubr.bf16.mxu0 0
        %316 = vmatmul.mubr.bf16.gmra.mrb[0].mxu0 %v267
        %v317 = vpop.f32.mrb[0].mxu0
        %v318 = vadd.f32 %v248, %v317
        %v319 = vpop.f32.mrb[0].mxu0
        %v320 = vpop.f32.mrb[0].mxu0
        %v321 = vadd.f32 %v248, %v320
        %v322 = vpop.f32.mrb[0].mxu0
        %323 = vmatprep.mubr.bf16.mxu0 0
        %324 = vmatmul.mubr.bf16.gmra.mrb[0].mxu0 %v270
        %v325 = vpop.f32.mrb[0].mxu0
        %v326 = vadd.f32 %v248, %v325
        %v327 = vpop.f32.mrb[0].mxu0
        %v328 = vpop.f32.mrb[0].mxu0
        %v329 = vadd.f32 %v248, %v328
        %v330 = vpop.f32.mrb[0].mxu0
        %331 = vmatprep.mubr.bf16.mxu0 0
        %332 = vmatmul.mubr.bf16.gmra.mrb[0].mxu0 %v273
        %v333 = vpop.f32.mrb[0].mxu0
        %v334 = vadd.f32 %v248, %v333
        %v335 = vpop.f32.mrb[0].mxu0
        %v336 = vpop.f32.mrb[0].mxu0
        %v337 = vadd.f32 %v248, %v336
        %v338 = vpop.f32.mrb[0].mxu0
        %339 = vdwg.mxu0
        %v340 = vmax.f32 %v310, 0.0
        %v341 = vmax.f32 %v313, 0.0
        %v342 = vmax.f32 %v318, 0.0
        %v343 = vmax.f32 %v321, 0.0
        %v344 = vmax.f32 %v326, 0.0
        %v345 = vmax.f32 %v329, 0.0
        %v346 = vmax.f32 %v334, 0.0
        %v347 = vmax.f32 %v337, 0.0
        %v348 = vpack.c.bf16 %v341, %v340
        %v349 = vpack.c.bf16 %v343, %v342
        %v350 = vpack.c.bf16 %v345, %v344
        %v351 = vpack.c.bf16 %v347, %v346
        %352 = vst [vmem:[#allocation2] sm:$0xff] %v348
        %353 = vst [vmem:[#allocation2 + $0x8] sm:$0xff] %v349
        %354 = vst [vmem:[#allocation2 + $0x10] sm:$0xff] %v350
        %355 = vst [vmem:[#allocation2 + $0x18] sm:$0xff] %v351
        %v356 = vld [vmem:[#allocation2] sm:$0xff]
        %v357 = vld [vmem:[#allocation2 + $0x8] sm:$0xff]
        %v358 = vld [vmem:[#allocation2 + $0x10] sm:$0xff]
        %v359 = vld [vmem:[#allocation2 + $0x18] sm:$0xff]
        %v360 = vld [vmem:[%s3] sm:$0xf]
        %v361 = vld [vmem:[%s3 + $0x4] sm:$0xf]
        %v362 = vld [vmem:[%s3 + $0x8] sm:$0xf]
        %v363 = vld [vmem:[%s3 + $0xc] sm:$0xf]
        %v364 = vld [vmem:[%s3 + $0x10] sm:$0xf]
        %v365 = vld [vmem:[%s3 + $0x14] sm:$0xf]
        %v366 = vld [vmem:[%s3 + $0x18] sm:$0xf]
        %v367 = vld [vmem:[%s3 + $0x1c] sm:$0xf]
        %v368 = vld [vmem:[%s3 + $0x20] sm:$0xf]
        %v369 = vld [vmem:[%s3 + $0x24] sm:$0xf]
        %v370 = vld [vmem:[%s3 + $0x28] sm:$0xf]
        %v371 = vld [vmem:[%s3 + $0x2c] sm:$0xf]
        %v372 = vld [vmem:[%s3 + $0x30] sm:$0xf]
        %v373 = vld [vmem:[%s3 + $0x34] sm:$0xf]
        %v374 = vld [vmem:[%s3 + $0x38] sm:$0xf]
        %v375 = vld [vmem:[%s3 + $0x3c] sm:$0xf]
        %v376 = vld [vmem:[%s4] sm:$0x1]
        %v378 = vlaneseq
        %v379 = vshrl.u32 %v378, 7
        %v380 = vsub.s32 0, %v379
        %v381 = vrot.slane %v376, %v380
        %v399 = vunpack.c.l.b16 %v360
        %v400 = vunpack.c.l.b16 %v361
        %v401 = vunpack.c.l.b16 %v362
        %v402 = vunpack.c.l.b16 %v363
        %v403 = vunpack.c.l.b16 %v364
        %v404 = vunpack.c.l.b16 %v365
        %v405 = vunpack.c.l.b16 %v366
        %v406 = vunpack.c.l.b16 %v367
        %v407 = vunpack.c.l.b16 %v368
        %v408 = vunpack.c.l.b16 %v369
        %v409 = vunpack.c.l.b16 %v370
        %v410 = vunpack.c.l.b16 %v371
        %v411 = vunpack.c.l.b16 %v372
        %v412 = vunpack.c.l.b16 %v373
        %v413 = vunpack.c.l.b16 %v374
        %v414 = vunpack.c.l.b16 %v375
        %v415 = vpack.c.b16 %v400, %v399
        %v416 = vpack.c.b16 %v402, %v401
        %v417 = vpack.c.b16 %v404, %v403
        %v418 = vpack.c.b16 %v406, %v405
        %v419 = vpack.c.b16 %v408, %v407
        %v420 = vpack.c.b16 %v410, %v409
        %v421 = vpack.c.b16 %v412, %v411
        %v422 = vpack.c.b16 %v414, %v413
        %431 = vmatprep.subr.bf16.mxu0 0
        %432 = vmatpush1.bf16.msra.mxu0 %v415
        %433 = vmatprep.subr.bf16.mxu0 0
        %434 = vmatpush1.bf16.msra.mxu0 %v416
        %435 = vmatprep.subr.bf16.mxu0 0
        %436 = vmatpush1.bf16.msra.mxu0 %v417
        %437 = vmatprep.subr.bf16.mxu0 0
        %438 = vmatpush1.bf16.msra.mxu0 %v418
        %439 = vmatprep.subr.bf16.mxu0 0
        %440 = vmatpush1.bf16.msra.mxu0 %v419
        %441 = vmatprep.subr.bf16.mxu0 0
        %442 = vmatpush1.bf16.msra.mxu0 %v420
        %443 = vmatprep.subr.bf16.mxu0 0
        %444 = vmatpush1.bf16.msra.mxu0 %v421
        %445 = vmatprep.subr.bf16.mxu0 0
        %446 = vmatpush1.bf16.msra.mxu0 %v422
        %447 = vmatprep.subr.bf16.mxu0 0
        %448 = vmatpush1.bf16.msra.mxu0 0
        %449 = vmatprep.subr.bf16.mxu0 0
        %450 = vmatpush1.bf16.msra.mxu0 0
        %451 = vmatprep.subr.bf16.mxu0 0
        %452 = vmatpush1.bf16.msra.mxu0 0
        %453 = vmatprep.subr.bf16.mxu0 0
        %454 = vmatpush1.bf16.msra.mxu0 0
        %455 = vmatprep.subr.bf16.mxu0 0
        %456 = vmatpush1.bf16.msra.mxu0 0
        %457 = vmatprep.subr.bf16.mxu0 0
        %458 = vmatpush1.bf16.msra.mxu0 0
        %459 = vmatprep.subr.bf16.mxu0 0
        %460 = vmatpush1.bf16.msra.mxu0 0
        %461 = vmatprep.subr.bf16.mxu0 0
        %462 = vmatpush1.bf16.msra.mxu0 0
        %463 = vmatprep.mubr.bf16.mxu0 0
        %464 = vmatmul.mubr.bf16.gmra.mrb[0].mxu0 %v356
        %v465 = vpop.f32.mrb[0].mxu0
        %v466 = vadd.f32 %v381, %v465
        %v467 = vpop.f32.mrb[0].mxu0
        %v468 = vpop.f32.mrb[0].mxu0
        %v469 = vadd.f32 %v381, %v468
        %v470 = vpop.f32.mrb[0].mxu0
        %471 = vmatprep.mubr.bf16.mxu0 0
        %472 = vmatmul.mubr.bf16.gmra.mrb[0].mxu0 %v357
        %v473 = vpop.f32.mrb[0].mxu0
        %v474 = vadd.f32 %v381, %v473
        %v475 = vpop.f32.mrb[0].mxu0
        %v476 = vpop.f32.mrb[0].mxu0
        %v477 = vadd.f32 %v381, %v476
        %v478 = vpop.f32.mrb[0].mxu0
        %479 = vmatprep.mubr.bf16.mxu0 0
        %480 = vmatmul.mubr.bf16.gmra.mrb[0].mxu0 %v358
        %v481 = vpop.f32.mrb[0].mxu0
        %v482 = vadd.f32 %v381, %v481
        %v483 = vpop.f32.mrb[0].mxu0
        %v484 = vpop.f32.mrb[0].mxu0
        %v485 = vadd.f32 %v381, %v484
        %v486 = vpop.f32.mrb[0].mxu0
        %487 = vmatprep.mubr.bf16.mxu0 0
        %488 = vmatmul.mubr.bf16.gmra.mrb[0].mxu0 %v359
        %v489 = vpop.f32.mrb[0].mxu0
        %v490 = vadd.f32 %v381, %v489
        %v491 = vpop.f32.mrb[0].mxu0
        %v492 = vpop.f32.mrb[0].mxu0
        %v493 = vadd.f32 %v381, %v492
        %v494 = vpop.f32.mrb[0].mxu0
        %495 = vdwg.mxu0
        %496 = vst [vmem:[%s218] sm:$0xff] %v466
        %497 = vst [vmem:[%s218 + $0x8] sm:$0xff] %v469
        %498 = vst [vmem:[%s218 + $0x10] sm:$0xff] %v474
        %499 = vst [vmem:[%s218 + $0x18] sm:$0xff] %v477
        %500 = vst [vmem:[%s218 + $0x20] sm:$0xff] %v482
        %501 = vst [vmem:[%s218 + $0x28] sm:$0xff] %v485
        %502 = vst [vmem:[%s218 + $0x30] sm:$0xff] %v490
        %503 = vst [vmem:[%s218 + $0x38] sm:$0xff] %v493
        %s504 = sand.u32 %s137, 1
        %s505 = scalar_lea.sflag [#allocation4], %s504
        %s506 = sand.u32 %s137, 1
        %s507 = smul.addr %s506, 64
        %s508 = scalar_lea.vmem [#allocation3], %s507
        // Predicated region
        $region41: #{tpu_custom_call.1} parent=39 // pred_check
          %p509 = pneg %p147
        $region42: #{tpu_custom_call.1} parent=39 // pred_check_branch
          %511 = sbr.rel (%p509) target = $region44
        $region43: #{tpu_custom_call.1} parent=39 // pred_region
          %s512 = smul.u32 8, %s19
          %s514 = ssub.s32 1024, 1024
          %515 = vsyncadd %s505, %s514
          %s516 = smul.addr %s512, 128
          %s517 = scalar_lea.hbm %s5, %s516
          %s518 = sshll.u32 %s508, 4
          %s519 = int_to_ptr.vmem [resolvable:$true] %s518
          %524 = dma.vmem_to_hbm [thread:$0]  %s519, 1024, %s517, %s505, 128, 128, 8
        $region44: #{tpu_custom_call.1} parent=39 // pred_fallthru
          _
      $region40: #{tpu_custom_call.1} parent=5 // pred_fallthru
        _
      %p525 = scmp.le.s32.totalorder 2, %s14
      // Predicated region
      $region45: #{tpu_custom_call.1} parent=5 // pred_check
        %p526 = pneg %p525
      $region46: #{tpu_custom_call.1} parent=5 // pred_check_branch
        %528 = sbr.rel (%p526) target = $region48
      $region47: #{tpu_custom_call.1} parent=5 // pred_region
        %s529 = ssub.s32 %s14, 2
        // Predicated region
        $region49: #{tpu_custom_call.1} parent=47 // pred_check
          %p530 = pneg %p153
        $region50: #{tpu_custom_call.1} parent=47 // pred_check_branch
          %532 = sbr.rel (%p530) target = $region52
        $region51: #{tpu_custom_call.1} parent=47 // pred_region
          %s533 = sand.u32 %s138, 1
          %s534 = scalar_lea.sflag [#allocation4], %s533
          %s535 = sand.u32 %s138, 1
          %s536 = smul.addr %s535, 64
          %s537 = scalar_lea.vmem [#allocation3], %s536
          %538 = dma.done %s534, 1024
        $region52: #{tpu_custom_call.1} parent=47 // pred_fallthru
          _
      $region48: #{tpu_custom_call.1} parent=5 // pred_fallthru
        _
    $region6: #{tpu_custom_call.1} parent=1 // loop_footer
      %s18 = sadd.s32 1, %s14
    $region7: #{tpu_custom_call.1} parent=1 // loop_footer_branch
      %13 = sbr.rel target = $region3
    $region8: #{tpu_custom_call.1} parent=1 // loop_exit
      _
    %539 = vsyncpa [#allocation4], 1
    %s540 = scalar_lea.sflag [#allocation4], 1
    %541 = vsyncpa %s540, 1

</llo_original>
